<compile_context>
chip_gen: v7x
topology: tpu7x:2x2x1
jax: 0.10.0
libtpu: 0.0.40
codegen_flags: <defaults>
</compile_context>

<pallas_src>
import jax
import jax.numpy as jnp
from jax.experimental import pallas as pl
from jax.experimental.pallas import tpu as pltpu

HID = 128  # fused hidden width (two 64-wide head hiddens packed side by side)


def _round_up(n, m):
    return ((n + m - 1) // m) * m


def _make_kernel(in_row, n_actions, compute_dtype):
    """Kernel closure over static row offsets of the packed weight slab."""
    o1, o2, o3, o4 = in_row, in_row + HID, in_row + 2 * HID, in_row + 3 * HID

    def kernel(x_ref, w_ref, b_ref, out_ref):
        relu = lambda t: jnp.maximum(t, 0.0)

        # common Linear(input, 64) + ReLU   (hidden cols 64:128 stay exactly 0)
        h = relu(jnp.dot(x_ref[...], w_ref[0:o1, :],
                         preferred_element_type=jnp.float32) + b_ref[0:1, :])
        # common Linear(64, 64) + ReLU
        h = relu(jnp.dot(h.astype(compute_dtype), w_ref[o1:o2, :],
                         preferred_element_type=jnp.float32) + b_ref[1:2, :])
        # fused head layer 1: [val_hidden | adv_hidden] in one 128-wide pass
        h = relu(jnp.dot(h.astype(compute_dtype), w_ref[o2:o3, :],
                         preferred_element_type=jnp.float32) + b_ref[2:3, :])
        # fused head layer 2 (block diagonal): z = [adv (n_actions) | val | 0..]
        z = jnp.dot(h.astype(compute_dtype), w_ref[o3:o4, :],
                    preferred_element_type=jnp.float32) + b_ref[3:4, :]

        # Dueling combine: Q = val + adv - mean(adv)
        adv = z[:, 0:n_actions]
        val = z[:, n_actions:n_actions + 1]
        adv_mean = jnp.sum(adv, axis=-1, keepdims=True) * (1.0 / n_actions)
        # Narrow (tb, n_actions) f32 store: only the useful Q-values hit HBM.
        out_ref[...] = val + adv - adv_mean

    return kernel


def pack_params(p, input_shape, n_actions, *, compute_dtype=jnp.bfloat16):
    """Pack per-layer (in, out) weights / (1, out) biases into two slabs.

    Weight slab rows (bf16): [w1 (in_row) | w2 (128) | head1 (128) | head2 (128)].
    head1 = [wv1 | wa1]; head2 is block-diagonal with wa2 -> columns
    0:n_actions and wv2 -> column n_actions, so Q is a contiguous leading
    slice of the final matmul output.  Biases stay f32.
    """
    assert n_actions + 1 <= HID, "fused head-2 packing requires n_actions + 1 <= 128"
    in_row = _round_up(input_shape, 8)
    w = jnp.zeros((in_row + 3 * HID, HID), jnp.float32)
    b = jnp.zeros((4, HID), jnp.float32)

    # layer 0: common Linear(input, 64) -> cols 0:64
    w = w.at[:input_shape, :64].set(p["w1"])
    b = b.at[0, :64].set(p["b1"][0])

    # layer 1: common Linear(64, 64) -> cols 0:64
    o1 = in_row
    w = w.at[o1:o1 + 64, :64].set(p["w2"])
    b = b.at[1, :64].set(p["b2"][0])

    # layer 2: fused head first layers [wv1 | wa1] -> (64, 128)
    o2 = in_row + HID
    w = w.at[o2:o2 + 64, :64].set(p["wv1"])
    w = w.at[o2:o2 + 64, 64:128].set(p["wa1"])
    b = b.at[2, :64].set(p["bv1"][0])
    b = b.at[2, 64:128].set(p["ba1"][0])

    # layer 3: block-diagonal fused second layers -> [adv | val | zeros]
    o3 = in_row + 2 * HID
    w = w.at[o3:o3 + 64, n_actions:n_actions + 1].set(p["wv2"])
    w = w.at[o3 + 64:o3 + 128, :n_actions].set(p["wa2"])
    b = b.at[3, n_actions].set(p["bv2"][0, 0])
    b = b.at[3, :n_actions].set(p["ba2"][0])
    return w.astype(compute_dtype), b


def dueling_dqn_forward(x, w_slab, b_slab, n_actions, *, block_b=512):
    """x: (B, input_shape). Returns (B, n_actions) float32 Q-values."""
    B, in_dim = x.shape
    in_row = w_slab.shape[0] - 3 * HID
    cdt = w_slab.dtype

    x_p = x.astype(cdt)
    if in_dim < in_row:                      # only round feature dim up to 8
        x_p = jnp.pad(x_p, ((0, 0), (0, in_row - in_dim)))

    # Batch tile: multiple of 8, <= block_b, and small enough that moderate B
    # still produces >= 2 grid steps (so v7x's two TensorCores both get work).
    half = (B + 1) // 2
    tb = max(8, min(block_b, _round_up(half, 8)))
    grid = ((B + tb - 1) // tb,)             # ragged final block is masked

    kernel = _make_kernel(in_row, n_actions, cdt)
    out = pl.pallas_call(
        kernel,
        out_shape=jax.ShapeDtypeStruct((B, n_actions), jnp.float32),
        grid=grid,
        in_specs=[
            pl.BlockSpec((tb, in_row), lambda i: (i, 0)),   # x: batch-tiled
            pl.BlockSpec(w_slab.shape, lambda i: (0, 0)),   # weights: resident
            pl.BlockSpec(b_slab.shape, lambda i: (0, 0)),   # biases: resident
        ],
        out_specs=pl.BlockSpec((tb, n_actions), lambda i: (i, 0)),
        compiler_params=pltpu.CompilerParams(
            dimension_semantics=("parallel",)),
    )(x_p, w_slab, b_slab)
    return out


def init_params(key, input_shape, n_actions):
    """Deterministic init. Weights stored as (in, out) — i.e. PyTorch W.T."""
    def linear(k, fan_in, fan_out):
        kw, kb = jax.random.split(k)
        bound = 1.0 / jnp.sqrt(fan_in)
        w = jax.random.uniform(kw, (fan_in, fan_out), jnp.float32, -bound, bound)
        b = jax.random.uniform(kb, (1, fan_out), jnp.float32, -bound, bound)
        return w, b

    ks = jax.random.split(key, 6)
    p = {}
    p["w1"], p["b1"] = linear(ks[0], input_shape, 64)
    p["w2"], p["b2"] = linear(ks[1], 64, 64)
    p["wv1"], p["bv1"] = linear(ks[2], 64, 64)
    p["wv2"], p["bv2"] = linear(ks[3], 64, 1)
    p["wa1"], p["ba1"] = linear(ks[4], 64, n_actions)  # placeholder split order
    p["wa2"], p["ba2"] = linear(ks[5], 64, n_actions)
    # fix head-1 adv layer to correct fan-out (64 -> 64)
    p["wa1"], p["ba1"] = linear(ks[4], 64, 64)
    return p


def reference_forward(x, p):
    """Plain-JAX f32 reference mirroring the PyTorch forward (unfused)."""
    relu = lambda t: jnp.maximum(t, 0.0)
    h = relu(x @ p["w1"] + p["b1"])
    h = relu(h @ p["w2"] + p["b2"])
    val = relu(h @ p["wv1"] + p["bv1"]) @ p["wv2"] + p["bv2"]
    adv = relu(h @ p["wa1"] + p["ba1"]) @ p["wa2"] + p["ba2"]
    return val + adv - adv.mean(axis=-1, keepdims=True)


if __name__ == "__main__":
    key = jax.random.PRNGKey(0)
    k_params, k_x = jax.random.split(key)

    batch = 8          # tiny-batch path is pure launch latency; callers with
    input_shape = 32   # throughput needs should batch many steps per call.
    n_actions = 4

    params = init_params(k_params, input_shape, n_actions)
    w_slab, b_slab = pack_params(params, input_shape, n_actions)
    x = jax.random.normal(k_x, (batch, input_shape), jnp.float32)

    out = dueling_dqn_forward(x, w_slab, b_slab, n_actions)
    out = jax.block_until_ready(out)

    ref = reference_forward(x, params)
    assert out.shape == (batch, n_actions)
    # bf16 inputs/weights with f32 accumulation -> relaxed tolerance vs f32 ref
    assert jnp.allclose(out, ref, atol=3e-2, rtol=3e-2), (
        f"max abs diff = {jnp.max(jnp.abs(out - ref))}")

    print("KERNEL_OK")
</pallas_src>

<mosaic_0001>
module attributes {stable_mosaic.version = 11 : i64} {
  func.func @kernel(%arg0: i32, %arg1: memref<8x32xbf16, #tpu.memory_space<vmem>>, %arg2: memref<416x128xbf16, #tpu.memory_space<vmem>>, %arg3: memref<4x128xf32, #tpu.memory_space<vmem>>, %arg4: memref<8x4xf32, #tpu.memory_space<vmem>>) attributes {dimension_semantics = [#tpu.dimension_semantics<parallel>], iteration_bounds = array<i64: 1>, scalar_prefetch = 0 : i64, scratch_operands = 0 : i64, tpu.core_type = #tpu.core_type<tc>, window_params = [{transform_indices = @transform_0, window_bounds = array<i64: 8, 32>}, {pipeline_mode = #tpu.pipeline_mode<synchronous>, transform_indices = @transform_1, window_bounds = array<i64: 416, 128>}, {pipeline_mode = #tpu.pipeline_mode<synchronous>, transform_indices = @transform_2, window_bounds = array<i64: 4, 128>}, {transform_indices = @transform_3, window_bounds = array<i64: 8, 4>}]} {
    %c0 = arith.constant 0 : index
    %c0_0 = arith.constant 0 : index
    %0 = vector.load %arg1[%c0, %c0_0] : memref<8x32xbf16, #tpu.memory_space<vmem>>, vector<8x32xbf16>
    %c0_1 = arith.constant 0 : index
    %c0_2 = arith.constant 0 : index
    %1 = vector.load %arg2[%c0_1, %c0_2] : memref<416x128xbf16, #tpu.memory_space<vmem>>, vector<32x128xbf16>
    %cst = arith.constant dense<0.000000e+00> : vector<8x128xf32>
    %2 = tpu.matmul %0, %1, %cst {dimension_numbers = #tpu.dot_dimension_numbers<[1], [0], [0], [1], [0, 0, 1, 1], [], []>} : vector<8x32xbf16>, vector<32x128xbf16>, vector<8x128xf32> -> vector<8x128xf32>
    %c0_3 = arith.constant 0 : index
    %c0_4 = arith.constant 0 : index
    %3 = vector.load %arg3[%c0_3, %c0_4] : memref<4x128xf32, #tpu.memory_space<vmem>>, vector<1x128xf32>
    %4 = vector.broadcast %3 : vector<1x128xf32> to vector<8x128xf32>
    %5 = arith.addf %2, %4 : vector<8x128xf32>
    %cst_5 = arith.constant 0.000000e+00 : f32
    %6 = vector.broadcast %cst_5 : f32 to vector<8x128xf32>
    %7 = arith.maximumf %5, %6 : vector<8x128xf32>
    %8 = arith.truncf %7 : vector<8x128xf32> to vector<8x128xbf16>
    %c32 = arith.constant 32 : index
    %c0_6 = arith.constant 0 : index
    %9 = vector.load %arg2[%c32, %c0_6] : memref<416x128xbf16, #tpu.memory_space<vmem>>, vector<128x128xbf16>
    %cst_7 = arith.constant dense<0.000000e+00> : vector<8x128xf32>
    %10 = tpu.matmul %8, %9, %cst_7 {dimension_numbers = #tpu.dot_dimension_numbers<[1], [0], [0], [1], [0, 0, 1, 1], [], []>} : vector<8x128xbf16>, vector<128x128xbf16>, vector<8x128xf32> -> vector<8x128xf32>
    %c1 = arith.constant 1 : index
    %c0_8 = arith.constant 0 : index
    %11 = vector.load %arg3[%c1, %c0_8] : memref<4x128xf32, #tpu.memory_space<vmem>>, vector<1x128xf32>
    %12 = vector.broadcast %11 : vector<1x128xf32> to vector<8x128xf32>
    %13 = arith.addf %10, %12 : vector<8x128xf32>
    %cst_9 = arith.constant 0.000000e+00 : f32
    %14 = vector.broadcast %cst_9 : f32 to vector<8x128xf32>
    %15 = arith.maximumf %13, %14 : vector<8x128xf32>
    %16 = arith.truncf %15 : vector<8x128xf32> to vector<8x128xbf16>
    %c160 = arith.constant 160 : index
    %c0_10 = arith.constant 0 : index
    %17 = vector.load %arg2[%c160, %c0_10] : memref<416x128xbf16, #tpu.memory_space<vmem>>, vector<128x128xbf16>
    %cst_11 = arith.constant dense<0.000000e+00> : vector<8x128xf32>
    %18 = tpu.matmul %16, %17, %cst_11 {dimension_numbers = #tpu.dot_dimension_numbers<[1], [0], [0], [1], [0, 0, 1, 1], [], []>} : vector<8x128xbf16>, vector<128x128xbf16>, vector<8x128xf32> -> vector<8x128xf32>
    %c2 = arith.constant 2 : index
    %c0_12 = arith.constant 0 : index
    %19 = vector.load %arg3[%c2, %c0_12] : memref<4x128xf32, #tpu.memory_space<vmem>>, vector<1x128xf32>
    %20 = vector.broadcast %19 : vector<1x128xf32> to vector<8x128xf32>
    %21 = arith.addf %18, %20 : vector<8x128xf32>
    %cst_13 = arith.constant 0.000000e+00 : f32
    %22 = vector.broadcast %cst_13 : f32 to vector<8x128xf32>
    %23 = arith.maximumf %21, %22 : vector<8x128xf32>
    %24 = arith.truncf %23 : vector<8x128xf32> to vector<8x128xbf16>
    %c288 = arith.constant 288 : index
    %c0_14 = arith.constant 0 : index
    %25 = vector.load %arg2[%c288, %c0_14] : memref<416x128xbf16, #tpu.memory_space<vmem>>, vector<128x128xbf16>
    %cst_15 = arith.constant dense<0.000000e+00> : vector<8x128xf32>
    %26 = tpu.matmul %24, %25, %cst_15 {dimension_numbers = #tpu.dot_dimension_numbers<[1], [0], [0], [1], [0, 0, 1, 1], [], []>} : vector<8x128xbf16>, vector<128x128xbf16>, vector<8x128xf32> -> vector<8x128xf32>
    %c3 = arith.constant 3 : index
    %c0_16 = arith.constant 0 : index
    %27 = vector.load %arg3[%c3, %c0_16] : memref<4x128xf32, #tpu.memory_space<vmem>>, vector<1x128xf32>
    %28 = vector.broadcast %27 : vector<1x128xf32> to vector<8x128xf32>
    %29 = arith.addf %26, %28 : vector<8x128xf32>
    %30 = vector.extract_strided_slice %29 {offsets = [0, 0], sizes = [8, 4], strides = [1, 1]} : vector<8x128xf32> to vector<8x4xf32>
    %31 = vector.extract_strided_slice %29 {offsets = [0, 4], sizes = [8, 1], strides = [1, 1]} : vector<8x128xf32> to vector<8x1xf32>
    %cst_17 = arith.constant dense<0.000000e+00> : vector<8xf32>
    %32 = vector.multi_reduction <add>, %30, %cst_17 [1] : vector<8x4xf32> to vector<8xf32>
    %33 = vector.shape_cast %32 : vector<8xf32> to vector<8x1xf32>
    %cst_18 = arith.constant 2.500000e-01 : f32
    %34 = vector.broadcast %cst_18 : f32 to vector<8x1xf32>
    %35 = arith.mulf %33, %34 : vector<8x1xf32>
    %36 = vector.broadcast %31 : vector<8x1xf32> to vector<8x4xf32>
    %37 = arith.addf %36, %30 : vector<8x4xf32>
    %38 = vector.broadcast %35 : vector<8x1xf32> to vector<8x4xf32>
    %39 = arith.subf %37, %38 : vector<8x4xf32>
    %c0_19 = arith.constant 0 : index
    %c0_20 = arith.constant 0 : index
    %40 = vector.load %arg4[%c0_19, %c0_20] : memref<8x4xf32, #tpu.memory_space<vmem>>, vector<8x4xf32>
    tpu.vector_store %arg4[%c0_19, %c0_20], %39 {strides = array<i32>} : memref<8x4xf32, #tpu.memory_space<vmem>>, vector<8x4xf32>,
    return
  }
  func.func @transform_0(%arg0: i32) -> (i32, i32) {
    %c0_i32 = arith.constant 0 : i32
    %c0_i32_0 = arith.constant 0 : i32
    return %arg0, %c0_i32 : i32, i32
  }
  func.func @transform_1(%arg0: i32) -> (i32, i32) {
    %c0_i32 = arith.constant 0 : i32
    %c0_i32_0 = arith.constant 0 : i32
    %c0_i32_1 = arith.constant 0 : i32
    return %c0_i32, %c0_i32_0 : i32, i32
  }
  func.func @transform_2(%arg0: i32) -> (i32, i32) {
    %c0_i32 = arith.constant 0 : i32
    %c0_i32_0 = arith.constant 0 : i32
    %c0_i32_1 = arith.constant 0 : i32
    return %c0_i32, %c0_i32_0 : i32, i32
  }
  func.func @transform_3(%arg0: i32) -> (i32, i32) {
    %c0_i32 = arith.constant 0 : i32
    %c0_i32_0 = arith.constant 0 : i32
    return %arg0, %c0_i32 : i32, i32
  }
}

</mosaic_0001>

<llo_original>
// kernel: tpu_custom_call.1
$region0: #{tpu_custom_call.1}
  #allocation0 [shape = 'u32[]', space=smem, size = 0x4, offset = 0x4, fixed_abs, tag = 'smem constant byte address 0x4 - core index']
  #allocation1 [shape = 'u32[144,128]{1,0:T(1,128)}', space=vmem, size = 0x12000, scoped, tag = 'internal scratch']
  %s0 = inlined_call_operand.hbm [shape: bf16[8,32], index: 0, kind: input, shape index: {}]
  %s1 = inlined_call_operand.hbm [shape: bf16[416,128], index: 1, kind: input, shape index: {}]
  %s2 = inlined_call_operand.vmem [shape: f32[4,128], index: 2, kind: input, shape index: {}]
  %s3 = inlined_call_operand.vmem [shape: f32[8,4], index: 3, kind: output, shape index: {}]
  %s4 = sld [smem:[#allocation0]]
  $region30: #{tpu_custom_call.1} parent=0
    _
  %s6 = ssub.s32 1, %s4
  %s7 = scalar_select 0, %s6, %s4
  $region1: #{tpu_custom_call.1} parent=0
    #allocation2 [shape = 'u8[2048]{0}', space=vmem, size = 0x800, scoped, tag = 'input window, operand 0, single buffered']
    #allocation3 [shape = 's32[1]{0}', space=sflag, size = 0x4, scoped, tag = 'scoped memory for tpu_custom_call.1']
    #allocation4 [shape = 'u8[106496]{0}', space=vmem, size = 0x1a000, scoped, tag = 'input window, operand 1, single buffered']
    #allocation5 [shape = 's32[1]{0}', space=sflag, size = 0x4, scoped, tag = 'scoped memory for tpu_custom_call.1']
    %8 = vsyncpa [#allocation3], 0
    %9 = vsyncpa [#allocation5], 0
    // Predicated region
    $region2: #{tpu_custom_call.1} parent=1 // pred_check
      _
    $region3: #{tpu_custom_call.1} parent=1 // pred_check_branch
      %11 = sbr.rel (0) target = $region5
    $region4: #{tpu_custom_call.1} parent=1 // pred_region
      %s13 = ssub.s32 64, 64
      %14 = vsyncadd [#allocation3], %s13
      %s16 = sshll.u32 [#allocation2], 4
      %s17 = int_to_ptr.vmem [resolvable:$true] %s16
      %19 = dma.hbm_to_vmem [thread:$0]  %s0, 64, %s17, [#allocation3]
    $region5: #{tpu_custom_call.1} parent=1 // pred_fallthru
      _
    // Predicated region
    $region6: #{tpu_custom_call.1} parent=1 // pred_check
      _
    $region7: #{tpu_custom_call.1} parent=1 // pred_check_branch
      %21 = sbr.rel (0) target = $region9
    $region8: #{tpu_custom_call.1} parent=1 // pred_region
      %s23 = ssub.s32 3328, 3328
      %24 = vsyncadd [#allocation5], %s23
      %s25 = sshll.u32 [#allocation4], 4
      %s26 = int_to_ptr.vmem [resolvable:$true] %s25
      %31 = dma.hbm_to_vmem [thread:$0]  %s1, 3328, %s26, [#allocation5], 64, 64, 4
    $region9: #{tpu_custom_call.1} parent=1 // pred_fallthru
      _
    // Predicated region
    $region10: #{tpu_custom_call.1} parent=1 // pred_check
      _
    $region11: #{tpu_custom_call.1} parent=1 // pred_check_branch
      %33 = sbr.rel (0) target = $region13
    $region12: #{tpu_custom_call.1} parent=1 // pred_region
      _
    $region13: #{tpu_custom_call.1} parent=1 // pred_fallthru
      _
    // Predicated region
    $region14: #{tpu_custom_call.1} parent=1 // pred_check
      _
    $region15: #{tpu_custom_call.1} parent=1 // pred_check_branch
      %35 = sbr.rel (0) target = $region17
    $region16: #{tpu_custom_call.1} parent=1 // pred_region
      %36 = dma.done [#allocation3], 64
    $region17: #{tpu_custom_call.1} parent=1 // pred_fallthru
      _
    // Predicated region
    $region18: #{tpu_custom_call.1} parent=1 // pred_check
      _
    $region19: #{tpu_custom_call.1} parent=1 // pred_check_branch
      %38 = sbr.rel (0) target = $region21
    $region20: #{tpu_custom_call.1} parent=1 // pred_region
      %39 = dma.done [#allocation5], 3328
    $region21: #{tpu_custom_call.1} parent=1 // pred_fallthru
      _
    %v41 = vld [vmem:[#allocation2] sm:$0xf]
    %v42 = vld [vmem:[#allocation4] sm:$0xf]
    %v43 = vld [vmem:[#allocation4 + $0x4] sm:$0xf]
    %v44 = vld [vmem:[#allocation4 + $0x8] sm:$0xf]
    %v45 = vld [vmem:[#allocation4 + $0xc] sm:$0xf]
    %v46 = vld [vmem:[%s2] sm:$0x1]
    %v47 = vlaneseq
    %v48 = vshrl.u32 %v47, 7
    %v49 = vsub.s32 0, %v48
    %v50 = vrot.slane %v46, %v49
    %v55 = vunpack.c.l.b16 %v42
    %v56 = vunpack.c.l.b16 %v43
    %v57 = vunpack.c.l.b16 %v44
    %v58 = vunpack.c.l.b16 %v45
    %v59 = vpack.c.b16 %v56, %v55
    %v60 = vpack.c.b16 %v58, %v57
    %vm63 = vcmask 261120
    %v65 = vsel %vm63, %v41, 0
    %67 = vmatprep.subr.bf16.mxu0 0
    %68 = vmatpush1.bf16.msra.mxu0 %v59
    %69 = vmatprep.subr.bf16.mxu0 0
    %70 = vmatpush1.bf16.msra.mxu0 %v60
    %71 = vmatprep.subr.bf16.mxu0 0
    %72 = vmatpush1.bf16.msra.mxu0 0
    %73 = vmatprep.subr.bf16.mxu0 0
    %74 = vmatpush1.bf16.msra.mxu0 0
    %75 = vmatprep.subr.bf16.mxu0 0
    %76 = vmatpush1.bf16.msra.mxu0 0
    %77 = vmatprep.subr.bf16.mxu0 0
    %78 = vmatpush1.bf16.msra.mxu0 0
    %79 = vmatprep.subr.bf16.mxu0 0
    %80 = vmatpush1.bf16.msra.mxu0 0
    %81 = vmatprep.subr.bf16.mxu0 0
    %82 = vmatpush1.bf16.msra.mxu0 0
    %83 = vmatprep.subr.bf16.mxu0 0
    %84 = vmatpush1.bf16.msra.mxu0 0
    %85 = vmatprep.subr.bf16.mxu0 0
    %86 = vmatpush1.bf16.msra.mxu0 0
    %87 = vmatprep.subr.bf16.mxu0 0
    %88 = vmatpush1.bf16.msra.mxu0 0
    %89 = vmatprep.subr.bf16.mxu0 0
    %90 = vmatpush1.bf16.msra.mxu0 0
    %91 = vmatprep.subr.bf16.mxu0 0
    %92 = vmatpush1.bf16.msra.mxu0 0
    %93 = vmatprep.subr.bf16.mxu0 0
    %94 = vmatpush1.bf16.msra.mxu0 0
    %95 = vmatprep.subr.bf16.mxu0 0
    %96 = vmatpush1.bf16.msra.mxu0 0
    %97 = vmatprep.subr.bf16.mxu0 0
    %98 = vmatpush1.bf16.msra.mxu0 0
    %99 = vmatprep.mubr.bf16.mxu0 0
    %100 = vmatmul.mubr.bf16.gmra.mrb[0].mxu0 %v65
    %v101 = vpop.f32.mrb[0].mxu0
    %v102 = vadd.f32 %v50, %v101
    %v103 = vpop.f32.mrb[0].mxu0
    %v104 = vpop.f32.mrb[0].mxu0
    %v105 = vpop.f32.mrb[0].mxu0
    %106 = vdwg.mxu0
    %v107 = vmax.f32 %v102, 0.0
    %v108 = vpack.c.bf16 %v107, %v107
    %v109 = vld [vmem:[#allocation4 + $0x10] sm:$0xf]
    %v110 = vld [vmem:[#allocation4 + $0x14] sm:$0xf]
    %v111 = vld [vmem:[#allocation4 + $0x18] sm:$0xf]
    %v112 = vld [vmem:[#allocation4 + $0x1c] sm:$0xf]
    %v113 = vld [vmem:[#allocation4 + $0x20] sm:$0xf]
    %v114 = vld [vmem:[#allocation4 + $0x24] sm:$0xf]
    %v115 = vld [vmem:[#allocation4 + $0x28] sm:$0xf]
    %v116 = vld [vmem:[#allocation4 + $0x2c] sm:$0xf]
    %v117 = vld [vmem:[#allocation4 + $0x30] sm:$0xf]
    %v118 = vld [vmem:[#allocation4 + $0x34] sm:$0xf]
    %v119 = vld [vmem:[#allocation4 + $0x38] sm:$0xf]
    %v120 = vld [vmem:[#allocation4 + $0x3c] sm:$0xf]
    %v121 = vld [vmem:[#allocation4 + $0x40] sm:$0xf]
    %v122 = vld [vmem:[#allocation4 + $0x44] sm:$0xf]
    %v123 = vld [vmem:[#allocation4 + $0x48] sm:$0xf]
    %v124 = vld [vmem:[#allocation4 + $0x4c] sm:$0xf]
    %v125 = vld [vmem:[%s2 + $0x1] sm:$0x1]
    %v126 = vlaneseq
    %v127 = vshrl.u32 %v126, 7
    %v128 = vsub.s32 0, %v127
    %v129 = vrot.slane %v125, %v128
    %v146 = vunpack.c.l.b16 %v109
    %v147 = vunpack.c.l.b16 %v110
    %v148 = vunpack.c.l.b16 %v111
    %v149 = vunpack.c.l.b16 %v112
    %v150 = vunpack.c.l.b16 %v113
    %v151 = vunpack.c.l.b16 %v114
    %v152 = vunpack.c.l.b16 %v115
    %v153 = vunpack.c.l.b16 %v116
    %v154 = vunpack.c.l.b16 %v117
    %v155 = vunpack.c.l.b16 %v118
    %v156 = vunpack.c.l.b16 %v119
    %v157 = vunpack.c.l.b16 %v120
    %v158 = vunpack.c.l.b16 %v121
    %v159 = vunpack.c.l.b16 %v122
    %v160 = vunpack.c.l.b16 %v123
    %v161 = vunpack.c.l.b16 %v124
    %v162 = vpack.c.b16 %v147, %v146
    %v163 = vpack.c.b16 %v149, %v148
    %v164 = vpack.c.b16 %v151, %v150
    %v165 = vpack.c.b16 %v153, %v152
    %v166 = vpack.c.b16 %v155, %v154
    %v167 = vpack.c.b16 %v157, %v156
    %v168 = vpack.c.b16 %v159, %v158
    %v169 = vpack.c.b16 %v161, %v160
    %178 = vmatprep.subr.bf16.mxu0 0
    %179 = vmatpush1.bf16.msra.mxu0 %v162
    %180 = vmatprep.subr.bf16.mxu0 0
    %181 = vmatpush1.bf16.msra.mxu0 %v163
    %182 = vmatprep.subr.bf16.mxu0 0
    %183 = vmatpush1.bf16.msra.mxu0 %v164
    %184 = vmatprep.subr.bf16.mxu0 0
    %185 = vmatpush1.bf16.msra.mxu0 %v165
    %186 = vmatprep.subr.bf16.mxu0 0
    %187 = vmatpush1.bf16.msra.mxu0 %v166
    %188 = vmatprep.subr.bf16.mxu0 0
    %189 = vmatpush1.bf16.msra.mxu0 %v167
    %190 = vmatprep.subr.bf16.mxu0 0
    %191 = vmatpush1.bf16.msra.mxu0 %v168
    %192 = vmatprep.subr.bf16.mxu0 0
    %193 = vmatpush1.bf16.msra.mxu0 %v169
    %194 = vmatprep.subr.bf16.mxu0 0
    %195 = vmatpush1.bf16.msra.mxu0 0
    %196 = vmatprep.subr.bf16.mxu0 0
    %197 = vmatpush1.bf16.msra.mxu0 0
    %198 = vmatprep.subr.bf16.mxu0 0
    %199 = vmatpush1.bf16.msra.mxu0 0
    %200 = vmatprep.subr.bf16.mxu0 0
    %201 = vmatpush1.bf16.msra.mxu0 0
    %202 = vmatprep.subr.bf16.mxu0 0
    %203 = vmatpush1.bf16.msra.mxu0 0
    %204 = vmatprep.subr.bf16.mxu0 0
    %205 = vmatpush1.bf16.msra.mxu0 0
    %206 = vmatprep.subr.bf16.mxu0 0
    %207 = vmatpush1.bf16.msra.mxu0 0
    %208 = vmatprep.subr.bf16.mxu0 0
    %209 = vmatpush1.bf16.msra.mxu0 0
    %210 = vmatprep.mubr.bf16.mxu0 0
    %211 = vmatmul.mubr.bf16.gmra.mrb[0].mxu0 %v108
    %v212 = vpop.f32.mrb[0].mxu0
    %v213 = vadd.f32 %v129, %v212
    %v214 = vpop.f32.mrb[0].mxu0
    %v215 = vpop.f32.mrb[0].mxu0
    %v216 = vpop.f32.mrb[0].mxu0
    %217 = vdwg.mxu0
    %v218 = vmax.f32 %v213, 0.0
    %v219 = vpack.c.bf16 %v218, %v218
    %v220 = vld [vmem:[#allocation4 + $0x50] sm:$0xf]
    %v221 = vld [vmem:[#allocation4 + $0x54] sm:$0xf]
    %v222 = vld [vmem:[#allocation4 + $0x58] sm:$0xf]
    %v223 = vld [vmem:[#allocation4 + $0x5c] sm:$0xf]
    %v224 = vld [vmem:[#allocation4 + $0x60] sm:$0xf]
    %v225 = vld [vmem:[#allocation4 + $0x64] sm:$0xf]
    %v226 = vld [vmem:[#allocation4 + $0x68] sm:$0xf]
    %v227 = vld [vmem:[#allocation4 + $0x6c] sm:$0xf]
    %v228 = vld [vmem:[#allocation4 + $0x70] sm:$0xf]
    %v229 = vld [vmem:[#allocation4 + $0x74] sm:$0xf]
    %v230 = vld [vmem:[#allocation4 + $0x78] sm:$0xf]
    %v231 = vld [vmem:[#allocation4 + $0x7c] sm:$0xf]
    %v232 = vld [vmem:[#allocation4 + $0x80] sm:$0xf]
    %v233 = vld [vmem:[#allocation4 + $0x84] sm:$0xf]
    %v234 = vld [vmem:[#allocation4 + $0x88] sm:$0xf]
    %v235 = vld [vmem:[#allocation4 + $0x8c] sm:$0xf]
    %v236 = vld [vmem:[%s2 + $0x2] sm:$0x1]
    %v237 = vlaneseq
    %v238 = vshrl.u32 %v237, 7
    %v239 = vsub.s32 0, %v238
    %v240 = vrot.slane %v236, %v239
    %v257 = vunpack.c.l.b16 %v220
    %v258 = vunpack.c.l.b16 %v221
    %v259 = vunpack.c.l.b16 %v222
    %v260 = vunpack.c.l.b16 %v223
    %v261 = vunpack.c.l.b16 %v224
    %v262 = vunpack.c.l.b16 %v225
    %v263 = vunpack.c.l.b16 %v226
    %v264 = vunpack.c.l.b16 %v227
    %v265 = vunpack.c.l.b16 %v228
    %v266 = vunpack.c.l.b16 %v229
    %v267 = vunpack.c.l.b16 %v230
    %v268 = vunpack.c.l.b16 %v231
    %v269 = vunpack.c.l.b16 %v232
    %v270 = vunpack.c.l.b16 %v233
    %v271 = vunpack.c.l.b16 %v234
    %v272 = vunpack.c.l.b16 %v235
    %v273 = vpack.c.b16 %v258, %v257
    %v274 = vpack.c.b16 %v260, %v259
    %v275 = vpack.c.b16 %v262, %v261
    %v276 = vpack.c.b16 %v264, %v263
    %v277 = vpack.c.b16 %v266, %v265
    %v278 = vpack.c.b16 %v268, %v267
    %v279 = vpack.c.b16 %v270, %v269
    %v280 = vpack.c.b16 %v272, %v271
    %289 = vmatprep.subr.bf16.mxu0 0
    %290 = vmatpush1.bf16.msra.mxu0 %v273
    %291 = vmatprep.subr.bf16.mxu0 0
    %292 = vmatpush1.bf16.msra.mxu0 %v274
    %293 = vmatprep.subr.bf16.mxu0 0
    %294 = vmatpush1.bf16.msra.mxu0 %v275
    %295 = vmatprep.subr.bf16.mxu0 0
    %296 = vmatpush1.bf16.msra.mxu0 %v276
    %297 = vmatprep.subr.bf16.mxu0 0
    %298 = vmatpush1.bf16.msra.mxu0 %v277
    %299 = vmatprep.subr.bf16.mxu0 0
    %300 = vmatpush1.bf16.msra.mxu0 %v278
    %301 = vmatprep.subr.bf16.mxu0 0
    %302 = vmatpush1.bf16.msra.mxu0 %v279
    %303 = vmatprep.subr.bf16.mxu0 0
    %304 = vmatpush1.bf16.msra.mxu0 %v280
    %305 = vmatprep.subr.bf16.mxu0 0
    %306 = vmatpush1.bf16.msra.mxu0 0
    %307 = vmatprep.subr.bf16.mxu0 0
    %308 = vmatpush1.bf16.msra.mxu0 0
    %309 = vmatprep.subr.bf16.mxu0 0
    %310 = vmatpush1.bf16.msra.mxu0 0
    %311 = vmatprep.subr.bf16.mxu0 0
    %312 = vmatpush1.bf16.msra.mxu0 0
    %313 = vmatprep.subr.bf16.mxu0 0
    %314 = vmatpush1.bf16.msra.mxu0 0
    %315 = vmatprep.subr.bf16.mxu0 0
    %316 = vmatpush1.bf16.msra.mxu0 0
    %317 = vmatprep.subr.bf16.mxu0 0
    %318 = vmatpush1.bf16.msra.mxu0 0
    %319 = vmatprep.subr.bf16.mxu0 0
    %320 = vmatpush1.bf16.msra.mxu0 0
    %321 = vmatprep.mubr.bf16.mxu0 0
    %322 = vmatmul.mubr.bf16.gmra.mrb[0].mxu0 %v219
    %v323 = vpop.f32.mrb[0].mxu0
    %v324 = vadd.f32 %v240, %v323
    %v325 = vpop.f32.mrb[0].mxu0
    %v326 = vpop.f32.mrb[0].mxu0
    %v327 = vpop.f32.mrb[0].mxu0
    %328 = vdwg.mxu0
    %v329 = vmax.f32 %v324, 0.0
    %v330 = vpack.c.bf16 %v329, %v329
    %v331 = vld [vmem:[#allocation4 + $0x90] sm:$0xf]
    %v332 = vld [vmem:[#allocation4 + $0x94] sm:$0xf]
    %v333 = vld [vmem:[#allocation4 + $0x98] sm:$0xf]
    %v334 = vld [vmem:[#allocation4 + $0x9c] sm:$0xf]
    %v335 = vld [vmem:[#allocation4 + $0xa0] sm:$0xf]
    %v336 = vld [vmem:[#allocation4 + $0xa4] sm:$0xf]
    %v337 = vld [vmem:[#allocation4 + $0xa8] sm:$0xf]
    %v338 = vld [vmem:[#allocation4 + $0xac] sm:$0xf]
    %v339 = vld [vmem:[#allocation4 + $0xb0] sm:$0xf]
    %v340 = vld [vmem:[#allocation4 + $0xb4] sm:$0xf]
    %v341 = vld [vmem:[#allocation4 + $0xb8] sm:$0xf]
    %v342 = vld [vmem:[#allocation4 + $0xbc] sm:$0xf]
    %v343 = vld [vmem:[#allocation4 + $0xc0] sm:$0xf]
    %v344 = vld [vmem:[#allocation4 + $0xc4] sm:$0xf]
    %v345 = vld [vmem:[#allocation4 + $0xc8] sm:$0xf]
    %v346 = vld [vmem:[#allocation4 + $0xcc] sm:$0xf]
    %v347 = vld [vmem:[%s2 + $0x3] sm:$0x1]
    %v348 = vlaneseq
    %v349 = vshrl.u32 %v348, 7
    %v350 = vsub.s32 0, %v349
    %v351 = vrot.slane %v347, %v350
    %v368 = vunpack.c.l.b16 %v331
    %v369 = vunpack.c.l.b16 %v332
    %v370 = vunpack.c.l.b16 %v333
    %v371 = vunpack.c.l.b16 %v334
    %v372 = vunpack.c.l.b16 %v335
    %v373 = vunpack.c.l.b16 %v336
    %v374 = vunpack.c.l.b16 %v337
    %v375 = vunpack.c.l.b16 %v338
    %v376 = vunpack.c.l.b16 %v339
    %v377 = vunpack.c.l.b16 %v340
    %v378 = vunpack.c.l.b16 %v341
    %v379 = vunpack.c.l.b16 %v342
    %v380 = vunpack.c.l.b16 %v343
    %v381 = vunpack.c.l.b16 %v344
    %v382 = vunpack.c.l.b16 %v345
    %v383 = vunpack.c.l.b16 %v346
    %v384 = vpack.c.b16 %v369, %v368
    %v385 = vpack.c.b16 %v371, %v370
    %v386 = vpack.c.b16 %v373, %v372
    %v387 = vpack.c.b16 %v375, %v374
    %v388 = vpack.c.b16 %v377, %v376
    %v389 = vpack.c.b16 %v379, %v378
    %v390 = vpack.c.b16 %v381, %v380
    %v391 = vpack.c.b16 %v383, %v382
    %400 = vmatprep.subr.bf16.mxu0 0
    %401 = vmatpush1.bf16.msra.mxu0 %v384
    %402 = vmatprep.subr.bf16.mxu0 0
    %403 = vmatpush1.bf16.msra.mxu0 %v385
    %404 = vmatprep.subr.bf16.mxu0 0
    %405 = vmatpush1.bf16.msra.mxu0 %v386
    %406 = vmatprep.subr.bf16.mxu0 0
    %407 = vmatpush1.bf16.msra.mxu0 %v387
    %408 = vmatprep.subr.bf16.mxu0 0
    %409 = vmatpush1.bf16.msra.mxu0 %v388
    %410 = vmatprep.subr.bf16.mxu0 0
    %411 = vmatpush1.bf16.msra.mxu0 %v389
    %412 = vmatprep.subr.bf16.mxu0 0
    %413 = vmatpush1.bf16.msra.mxu0 %v390
    %414 = vmatprep.subr.bf16.mxu0 0
    %415 = vmatpush1.bf16.msra.mxu0 %v391
    %416 = vmatprep.subr.bf16.mxu0 0
    %417 = vmatpush1.bf16.msra.mxu0 0
    %418 = vmatprep.subr.bf16.mxu0 0
    %419 = vmatpush1.bf16.msra.mxu0 0
    %420 = vmatprep.subr.bf16.mxu0 0
    %421 = vmatpush1.bf16.msra.mxu0 0
    %422 = vmatprep.subr.bf16.mxu0 0
    %423 = vmatpush1.bf16.msra.mxu0 0
    %424 = vmatprep.subr.bf16.mxu0 0
    %425 = vmatpush1.bf16.msra.mxu0 0
    %426 = vmatprep.subr.bf16.mxu0 0
    %427 = vmatpush1.bf16.msra.mxu0 0
    %428 = vmatprep.subr.bf16.mxu0 0
    %429 = vmatpush1.bf16.msra.mxu0 0
    %430 = vmatprep.subr.bf16.mxu0 0
    %431 = vmatpush1.bf16.msra.mxu0 0
    %432 = vmatprep.mubr.bf16.mxu0 0
    %433 = vmatmul.mubr.bf16.gmra.mrb[0].mxu0 %v330
    %v434 = vpop.f32.mrb[0].mxu0
    %v435 = vadd.f32 %v351, %v434
    %v436 = vpop.f32.mrb[0].mxu0
    %v437 = vpop.f32.mrb[0].mxu0
    %v438 = vpop.f32.mrb[0].mxu0
    %439 = vdwg.mxu0
    %vm440 = vcmask 31744
    %v441 = vsel %vm440, %v435, 0.0
    %442 = vadd.xlane.f32.xlu0 %v441
    %v443 = vpop.xlane.xlu0 %442
    %v444 = vmul.f32 %v443, 0.25
    %446 = vset.pattern.permute.xlu0 4
    %447 = vperm.xlu0 %446, %v435
    %v448 = vpop.permute.xlu0 %447
    %v450 = vadd.f32 %v448, %v435
    %v451 = vsub.f32 %v450, %v444
    %452 = vst.msk [vmem:[%s3] sm:$0xff] %vm440, %v451
    // Predicated region
    $region22: #{tpu_custom_call.1} parent=1 // pred_check
      _
    $region23: #{tpu_custom_call.1} parent=1 // pred_check_branch
      %454 = sbr.rel (0) target = $region25
    $region24: #{tpu_custom_call.1} parent=1 // pred_region
      _
    $region25: #{tpu_custom_call.1} parent=1 // pred_fallthru
      _
    // Predicated region
    $region26: #{tpu_custom_call.1} parent=1 // pred_check
      _
    $region27: #{tpu_custom_call.1} parent=1 // pred_check_branch
      %456 = sbr.rel (0) target = $region29
    $region28: #{tpu_custom_call.1} parent=1 // pred_region
      _
    $region29: #{tpu_custom_call.1} parent=1 // pred_fallthru
      _
    %457 = vsyncpa [#allocation3], 1
    %458 = vsyncpa [#allocation5], 1

</llo_original>
